<compile_context>
chip_gen: v7x
topology: tpu7x:2x2x1
jax: 0.10.0
libtpu: 0.0.40
codegen_flags: <defaults>
</compile_context>

<pallas_src>
import functools

import jax
import jax.numpy as jnp
from jax.experimental import pallas as pl
from jax.experimental.pallas import tpu as pltpu

_LANE = 128
_SUBLANE = 8
_ACC_ROWS = 4 * _SUBLANE  # 4 interleaved (8,128) partial accumulators


def _wbce_kernel(p_ref, t_ref, o_ref, acc_ref, *,
                 real_weight, fake_weight, rows, tile_rows, steps):
    i = pl.program_id(0)  # chunk (one per TensorCore on v7x)
    j = pl.program_id(1)  # streaming step within the chunk

    @pl.when(j == 0)
    def _():
        acc_ref[...] = jnp.zeros_like(acc_ref)

    p = p_ref[...].astype(jnp.float32)
    t = t_ref[...].astype(jnp.float32)

    # torch.binary_cross_entropy clamps both log terms at -100; log1p(-p)
    # matches torch's numerics near p -> 1 better than log(1 - p).  Logs run
    # on the EUP slot (free for this HBM-bound kernel on v5e/v6e).
    log_p = jnp.maximum(jnp.log(p), -100.0)
    log_1mp = jnp.maximum(jnp.log1p(-p), -100.0)

    # Algebraically identical to the torch formula (holds for soft targets):
    #   w     = t*rw + (1-t)*fw   = fw + t*(rw - fw)
    #   inner = t*lp + (1-t)*l1mp = l1mp + t*(lp - l1mp)
    #   loss  = -w * inner        = neg_w * inner
    # Constants (fw - rw) and (-fw) fold at trace time; ~3-4 fewer VALU
    # ops/element than the naive form (matters on v7x where faster HBM can
    # expose the VPU slot).
    neg_w = t * (fake_weight - real_weight) - fake_weight
    inner = log_1mp + t * (log_p - log_1mp)
    loss = neg_w * inner

    # Mask rows past the true extent: covers the padded portion of a partial
    # last block and any clamped duplicate blocks (see index_map).  jnp.where
    # is a select, so NaNs computed from garbage padding rows never
    # contaminate valid lanes.
    block_start = (i * steps + j) * tile_rows
    row_ids = jax.lax.broadcasted_iota(jnp.int32, (tile_rows, _LANE), 0)
    loss = jnp.where(block_start + row_ids < rows, loss, 0.0)

    # Fold the tile into the VMEM vector accumulator with pure VPU adds.
    # The 32-row accumulator keeps 4 (8,128) vreg groups accumulating
    # independently (shorter dependency chain, more VALU ILP).
    if tile_rows % _ACC_ROWS == 0:
        acc_ref[...] += loss.reshape(
            tile_rows // _ACC_ROWS, _ACC_ROWS, _LANE).sum(axis=0)
    else:
        acc_ref[0:_SUBLANE, :] += loss.reshape(
            tile_rows // _SUBLANE, _SUBLANE, _LANE).sum(axis=0)

    # Single cross-lane/sublane reduce, only on the final step of this chunk.
    @pl.when(j == pl.num_programs(1) - 1)
    def _():
        o_ref[0, 0] = jnp.sum(acc_ref[...])


def _reference_loss(preds, target, real_weight, fake_weight):
    """Pure-JAX reference / small-input fallback (same clamping as torch)."""
    p = preds.astype(jnp.float32)
    t = target.astype(jnp.float32)
    w = t * real_weight + (1.0 - t) * fake_weight
    log_p = jnp.maximum(jnp.log(p), -100.0)
    log_1mp = jnp.maximum(jnp.log1p(-p), -100.0)
    return jnp.mean(-w * (t * log_p + (1.0 - t) * log_1mp))


def _default_num_par():
    """2 chunks only on v7x (2 TensorCores/chip); 1 on single-TC v5e/v6e."""
    try:
        kind = jax.devices()[0].device_kind.lower()
    except Exception:  # pragma: no cover - defensive
        return 1
    return 2 if ("v7" in kind or "7x" in kind) else 1


def pointnet_weighted_bce(preds, target, *, real_weight, fake_weight,
                          tile_rows=2048, num_par=None,
                          min_kernel_elements=1 << 20):
    """Mean weighted BCE over all elements of preds/target (same shape)."""
    assert preds.shape == target.shape
    n = preds.size

    # Sublane alignment for the tile's row dim (16 for bf16, 32 for int8).
    itemsize = min(jnp.dtype(preds.dtype).itemsize,
                   jnp.dtype(target.dtype).itemsize)
    align = _SUBLANE * max(1, 4 // int(itemsize))

    # Small-input fallback: kernel launch + pipeline warm-up dominates tiny
    # inputs; plain XLA fusion is strictly better there.
    if n < max(int(min_kernel_elements), align * _LANE):
        return _reference_loss(preds, target, real_weight, fake_weight)

    if num_par is None:
        num_par = _default_num_par()
    num_par = max(1, int(num_par))

    flat_p = preds.reshape(-1)
    flat_t = target.reshape(-1)

    # Lane-dense (rows, 128) slab.  The reshape is layout-preserving (no HBM
    # copy).  Only if n isn't a multiple of 128 do we pad minimally
    # (<=127 elements) with (p=1, t=1), which contributes exactly zero loss;
    # the mean still divides by the true element count n.
    rem = n % _LANE
    if rem:
        pad = _LANE - rem
        flat_p = jnp.pad(flat_p, (0, pad), constant_values=1)
        flat_t = jnp.pad(flat_t, (0, pad), constant_values=1)
    rows = flat_p.shape[0] // _LANE
    p2d = flat_p.reshape(rows, _LANE)
    t2d = flat_t.reshape(rows, _LANE)

    # Tile sizing: default 2048 rows (f32) -> 2 inputs x 2 pipeline buffers x
    # 1 MiB = 4 MiB double-buffered input.  Cap at 4096 rows (8 MiB) so the
    # v5e 16 MiB scoped-VMEM default always holds (v6e/v7x scoped default is
    # 32 MiB); raise vmem_limit_bytes explicitly if you want to go bigger.
    rows_per_chunk = pl.cdiv(rows, num_par)
    tr = min(int(tile_rows), 4096, int(rows_per_chunk), int(rows))
    tr = (tr // align) * align
    tr = max(align, tr)                      # always a multiple of 8, <= rows
    steps = pl.cdiv(rows, num_par * tr)      # steps per chunk
    nblocks = pl.cdiv(rows, tr)              # real blocks in the slab
    last_block = nblocks - 1

    kernel = functools.partial(
        _wbce_kernel,
        real_weight=float(real_weight),
        fake_weight=float(fake_weight),
        rows=int(rows),
        tile_rows=int(tr),
        steps=int(steps),
    )

    # Clamp the block index so grid overhang never DMAs out of bounds; the
    # in-kernel row mask (computed from the *unclamped* logical position)
    # makes duplicated blocks contribute exactly zero.
    def in_index_map(i, j):
        return (jnp.minimum(i * steps + j, last_block), 0)

    in_spec = pl.BlockSpec((tr, _LANE), in_index_map)

    partials = pl.pallas_call(
        kernel,
        out_shape=jax.ShapeDtypeStruct((num_par, 1), jnp.float32),
        grid=(num_par, steps),
        in_specs=[in_spec, in_spec],
        out_specs=pl.BlockSpec((1, 1), lambda i, j: (i, 0),
                               memory_space=pltpu.SMEM),
        scratch_shapes=[pltpu.VMEM((_ACC_ROWS, _LANE), jnp.float32)],
        compiler_params=pltpu.CompilerParams(
            dimension_semantics=("parallel", "arbitrary")),
    )(p2d, t2d)

    # Combine the per-chunk partial sums; mean over the TRUE element count.
    return jnp.sum(partials) / jnp.float32(n)


if __name__ == "__main__":
    # Deterministic "module params" (gin-configured scalars in the original).
    REAL_WEIGHT = 2.0
    FAKE_WEIGHT = 0.5

    key = jax.random.PRNGKey(0)
    k1, k2, k3, k4 = jax.random.split(key, 4)

    # Check 1: small NCHW shape consistent with the module (B=2, C=4, 16x16).
    # min_kernel_elements=0 forces the Pallas path for the demo (production
    # default routes <1M-element inputs to the plain-JAX fallback).
    shape1 = (2, 4, 16, 16)
    preds1 = jax.nn.sigmoid(jax.random.normal(k1, shape1, dtype=jnp.float32))
    target1 = jax.random.bernoulli(k2, 0.5, shape1).astype(jnp.float32)
    loss1 = pointnet_weighted_bce(
        preds1, target1, real_weight=REAL_WEIGHT, fake_weight=FAKE_WEIGHT,
        min_kernel_elements=0)
    loss1 = jax.block_until_ready(loss1)
    ref1 = _reference_loss(preds1, target1, REAL_WEIGHT, FAKE_WEIGHT)
    assert jnp.allclose(loss1, ref1, rtol=1e-5, atol=1e-6), (loss1, ref1)

    # Check 2: ragged size (not a multiple of 128) with multiple grid steps,
    # exercising the partial-block row mask and clamped duplicate blocks.
    shape2 = (3, 5, 37, 129)
    preds2 = jax.nn.sigmoid(jax.random.normal(k3, shape2, dtype=jnp.float32))
    target2 = jax.random.bernoulli(k4, 0.5, shape2).astype(jnp.float32)
    loss2 = pointnet_weighted_bce(
        preds2, target2, real_weight=REAL_WEIGHT, fake_weight=FAKE_WEIGHT,
        tile_rows=128, min_kernel_elements=0)
    loss2 = jax.block_until_ready(loss2)
    ref2 = _reference_loss(preds2, target2, REAL_WEIGHT, FAKE_WEIGHT)
    assert jnp.allclose(loss2, ref2, rtol=1e-4, atol=1e-6), (loss2, ref2)

    print("KERNEL_OK")
</pallas_src>

<mosaic_0001>
module attributes {stable_mosaic.version = 11 : i64} {
  func.func @_wbce_kernel(%arg0: i32, %arg1: i32, %arg2: memref<16x128xf32, #tpu.memory_space<vmem>>, %arg3: memref<16x128xf32, #tpu.memory_space<vmem>>, %arg4: memref<1x1xf32, #tpu.memory_space<smem>>, %arg5: memref<32x128xf32, #tpu.memory_space<vmem>>) attributes {dimension_semantics = [#tpu.dimension_semantics<parallel>, #tpu.dimension_semantics<arbitrary>], iteration_bounds = array<i64: 1, 1>, scalar_prefetch = 0 : i64, scratch_operands = 1 : i64, tpu.core_type = #tpu.core_type<tc>, window_params = [{transform_indices = @transform_0, window_bounds = array<i64: 16, 128>}, {transform_indices = @transform_1, window_bounds = array<i64: 16, 128>}, {transform_indices = @transform_2, window_bounds = array<i64: 1, 1>}]} {
    %c0_i32 = arith.constant 0 : i32
    %0 = arith.cmpi eq, %arg1, %c0_i32 : i32
    %1 = arith.extui %0 : i1 to i32
    %c0_i32_0 = arith.constant 0 : i32
    %2 = arith.cmpi ne, %1, %c0_i32_0 : i32
    scf.if %2 {
      %cst_17 = arith.constant 0.000000e+00 : f32
      %39 = vector.broadcast %cst_17 : f32 to vector<32x128xf32>
      %c0_18 = arith.constant 0 : index
      %c0_19 = arith.constant 0 : index
      %40 = vector.load %arg5[%c0_18, %c0_19] : memref<32x128xf32, #tpu.memory_space<vmem>>, vector<32x128xf32>
      tpu.vector_store %arg5[%c0_18, %c0_19], %39 {strides = array<i32>} : memref<32x128xf32, #tpu.memory_space<vmem>>, vector<32x128xf32>,
    } else {
    }
    %c0 = arith.constant 0 : index
    %c0_1 = arith.constant 0 : index
    %3 = vector.load %arg2[%c0, %c0_1] : memref<16x128xf32, #tpu.memory_space<vmem>>, vector<16x128xf32>
    %c0_2 = arith.constant 0 : index
    %c0_3 = arith.constant 0 : index
    %4 = vector.load %arg3[%c0_2, %c0_3] : memref<16x128xf32, #tpu.memory_space<vmem>>, vector<16x128xf32>
    %5 = math.log %3 : vector<16x128xf32>
    %cst = arith.constant -1.000000e+02 : f32
    %6 = vector.broadcast %cst : f32 to vector<16x128xf32>
    %7 = arith.maximumf %5, %6 : vector<16x128xf32>
    %cst_4 = arith.constant 0.000000e+00 : f32
    %8 = vector.broadcast %cst_4 : f32 to vector<16x128xf32>
    %9 = arith.subf %8, %3 : vector<16x128xf32>
    %10 = math.log1p %9 : vector<16x128xf32>
    %cst_5 = arith.constant -1.000000e+02 : f32
    %11 = vector.broadcast %cst_5 : f32 to vector<16x128xf32>
    %12 = arith.maximumf %10, %11 : vector<16x128xf32>
    %cst_6 = arith.constant -1.500000e+00 : f32
    %13 = vector.broadcast %cst_6 : f32 to vector<16x128xf32>
    %14 = arith.mulf %4, %13 : vector<16x128xf32>
    %cst_7 = arith.constant 5.000000e-01 : f32
    %15 = vector.broadcast %cst_7 : f32 to vector<16x128xf32>
    %16 = arith.subf %14, %15 : vector<16x128xf32>
    %17 = arith.subf %7, %12 : vector<16x128xf32>
    %18 = arith.mulf %4, %17 : vector<16x128xf32>
    %19 = arith.addf %12, %18 : vector<16x128xf32>
    %20 = arith.mulf %16, %19 : vector<16x128xf32>
    %c1_i32 = arith.constant 1 : i32
    %21 = arith.muli %arg0, %c1_i32 : i32
    %22 = arith.addi %21, %arg1 : i32
    %c16_i32 = arith.constant 16 : i32
    %23 = arith.muli %22, %c16_i32 : i32
    %24 = tpu.iota {dimensions = array<i32: 0>} : vector<16x128xi32>
    %25 = vector.broadcast %23 : i32 to vector<16x128xi32>
    %26 = arith.addi %25, %24 : vector<16x128xi32>
    %c16_i32_8 = arith.constant 16 : i32
    %27 = vector.broadcast %c16_i32_8 : i32 to vector<16x128xi32>
    %28 = arith.cmpi slt, %26, %27 : vector<16x128xi32>
    %cst_9 = arith.constant 0.000000e+00 : f32
    %29 = vector.broadcast %cst_9 : f32 to vector<16x128xf32>
    %30 = arith.select %28, %20, %29 : vector<16x128xi1>, vector<16x128xf32>
    %c0_10 = arith.constant 0 : index
    %c0_11 = arith.constant 0 : index
    %31 = vector.load %arg5[%c0_10, %c0_11] : memref<32x128xf32, #tpu.memory_space<vmem>>, vector<8x128xf32>
    %32 = vector.shape_cast %30 : vector<16x128xf32> to vector<2x8x128xf32>
    %cst_12 = arith.constant dense<0.000000e+00> : vector<8x128xf32>
    %33 = vector.multi_reduction <add>, %32, %cst_12 [0] : vector<2x8x128xf32> to vector<8x128xf32>
    %34 = arith.addf %31, %33 : vector<8x128xf32>
    %c0_13 = arith.constant 0 : index
    %c0_14 = arith.constant 0 : index
    %35 = vector.load %arg5[%c0_13, %c0_14] : memref<32x128xf32, #tpu.memory_space<vmem>>, vector<8x128xf32>
    tpu.vector_store %arg5[%c0_13, %c0_14], %34 {strides = array<i32>} : memref<32x128xf32, #tpu.memory_space<vmem>>, vector<8x128xf32>,
    %c0_i32_15 = arith.constant 0 : i32
    %36 = arith.cmpi eq, %arg1, %c0_i32_15 : i32
    %37 = arith.extui %36 : i1 to i32
    %c0_i32_16 = arith.constant 0 : i32
    %38 = arith.cmpi ne, %37, %c0_i32_16 : i32
    scf.if %38 {
      %c0_17 = arith.constant 0 : index
      %c0_18 = arith.constant 0 : index
      %39 = vector.load %arg5[%c0_17, %c0_18] : memref<32x128xf32, #tpu.memory_space<vmem>>, vector<32x128xf32>
      %40 = vector.shape_cast %39 : vector<32x128xf32> to vector<1x32x128xf32>
      %cst_19 = arith.constant dense<0.000000e+00> : vector<1xf32>
      %41 = vector.multi_reduction <add>, %40, %cst_19 [1, 2] : vector<1x32x128xf32> to vector<1xf32>
      %42 = vector.shape_cast %41 : vector<1xf32> to vector<1x1x1xf32>
      %43 = vector.extract %42[0, 0, 0] : f32 from vector<1x1x1xf32>
      %c0_20 = arith.constant 0 : index
      %c0_21 = arith.constant 0 : index
      %44 = memref.load %arg4[%c0_20, %c0_21] : memref<1x1xf32, #tpu.memory_space<smem>>
      memref.store %43, %arg4[%c0_20, %c0_21] : memref<1x1xf32, #tpu.memory_space<smem>>
    } else {
    }
    return
  }
  func.func @transform_0(%arg0: i32, %arg1: i32) -> (i32, i32) {
    %c1_i32 = arith.constant 1 : i32
    %0 = arith.muli %arg0, %c1_i32 : i32
    %1 = arith.addi %0, %arg1 : i32
    %c0_i32 = arith.constant 0 : i32
    %2 = arith.minsi %1, %c0_i32 : i32
    %c0_i32_0 = arith.constant 0 : i32
    %c0_i32_1 = arith.constant 0 : i32
    return %2, %c0_i32_0 : i32, i32
  }
  func.func @transform_1(%arg0: i32, %arg1: i32) -> (i32, i32) {
    %c1_i32 = arith.constant 1 : i32
    %0 = arith.muli %arg0, %c1_i32 : i32
    %1 = arith.addi %0, %arg1 : i32
    %c0_i32 = arith.constant 0 : i32
    %2 = arith.minsi %1, %c0_i32 : i32
    %c0_i32_0 = arith.constant 0 : i32
    %c0_i32_1 = arith.constant 0 : i32
    return %2, %c0_i32_0 : i32, i32
  }
  func.func @transform_2(%arg0: i32, %arg1: i32) -> (i32, i32) {
    %c0_i32 = arith.constant 0 : i32
    %c0_i32_0 = arith.constant 0 : i32
    return %arg0, %c0_i32 : i32, i32
  }
}

</mosaic_0001>

<llo_original>
// kernel: tpu_custom_call.1
$region0: #{tpu_custom_call.1}
  #allocation0 [shape = 'u32[]', space=smem, size = 0x4, offset = 0x4, fixed_abs, tag = 'smem constant byte address 0x4 - core index']
  #allocation1 [shape = 'u32[144,128]{1,0:T(1,128)}', space=vmem, size = 0x12000, scoped, tag = 'internal scratch']
  #allocation2 [shape = 'f32[32,128]{1,0:T(8,128)}', space=vmem, size = 0x4000, scoped, tag = 'scratch operand']
  %s0 = inlined_call_operand.hbm [shape: f32[16,128], index: 0, kind: input, shape index: {}]
  %s1 = inlined_call_operand.hbm [shape: f32[16,128], index: 1, kind: input, shape index: {}]
  %s2 = inlined_call_operand.hbm [shape: f32[1,1], index: 2, kind: output, shape index: {}]
  %s3 = sld [smem:[#allocation0]]
  $region34: #{tpu_custom_call.1} parent=0
    _
  %s5 = ssub.s32 1, %s3
  %s6 = scalar_select 0, %s5, %s3
  $region1: #{tpu_custom_call.1} parent=0
    #allocation3 [shape = 'u8[8192]{0}', space=vmem, size = 0x2000, scoped, tag = 'input window, operand 0, single buffered']
    #allocation4 [shape = 's32[1]{0}', space=sflag, size = 0x4, scoped, tag = 'scoped memory for tpu_custom_call.1']
    #allocation5 [shape = 's32[1]{0}', space=sflag, size = 0x4, scoped, tag = 'scoped memory for tpu_custom_call.1']
    #allocation6 [shape = 'u8[8192]{0}', space=vmem, size = 0x2000, scoped, tag = 'input window, operand 1, single buffered']
    #allocation7 [shape = 's32[1]{0}', space=sflag, size = 0x4, scoped, tag = 'scoped memory for tpu_custom_call.1']
    #allocation8 [shape = 'u8[512]{0}', space=smem, size = 0x200, scoped, tag = 'output window, operand 0, single buffered']
    %7 = vsyncpa [#allocation4], 0
    %8 = vsyncpa [#allocation7], 0
    %9 = vsyncpa [#allocation5], 0
    // Predicated region
    $region2: #{tpu_custom_call.1} parent=1 // pred_check
      _
    $region3: #{tpu_custom_call.1} parent=1 // pred_check_branch
      %11 = sbr.rel (0) target = $region5
    $region4: #{tpu_custom_call.1} parent=1 // pred_region
      %s12 = sadd.s32 0, 0
      %p13 = scmp.lt.s32.totalorder %s12, 0
      %s14 = scalar_select %p13, %s12, 0
      %s15 = smul.u32 2, %s14
      %s17 = ssub.s32 256, 256
      %18 = vsyncadd [#allocation4], %s17
      %s19 = smul.addr %s15, 128
      %s20 = scalar_lea.hbm %s0, %s19
      %s21 = sshll.u32 [#allocation3], 4
      %s22 = int_to_ptr.vmem [resolvable:$true] %s21
      %27 = dma.hbm_to_vmem [thread:$0]  %s20, 256, %s22, [#allocation4], 128, 128, 8
    $region5: #{tpu_custom_call.1} parent=1 // pred_fallthru
      _
    // Predicated region
    $region6: #{tpu_custom_call.1} parent=1 // pred_check
      _
    $region7: #{tpu_custom_call.1} parent=1 // pred_check_branch
      %29 = sbr.rel (0) target = $region9
    $region8: #{tpu_custom_call.1} parent=1 // pred_region
      %s30 = sadd.s32 0, 0
      %p31 = scmp.lt.s32.totalorder %s30, 0
      %s32 = scalar_select %p31, %s30, 0
      %s33 = smul.u32 2, %s32
      %s35 = ssub.s32 256, 256
      %36 = vsyncadd [#allocation7], %s35
      %s37 = smul.addr %s33, 128
      %s38 = scalar_lea.hbm %s1, %s37
      %s39 = sshll.u32 [#allocation6], 4
      %s40 = int_to_ptr.vmem [resolvable:$true] %s39
      %45 = dma.hbm_to_vmem [thread:$0]  %s38, 256, %s40, [#allocation7], 128, 128, 8
    $region9: #{tpu_custom_call.1} parent=1 // pred_fallthru
      _
    // Predicated region
    $region10: #{tpu_custom_call.1} parent=1 // pred_check
      _
    $region11: #{tpu_custom_call.1} parent=1 // pred_check_branch
      %47 = sbr.rel (0) target = $region13
    $region12: #{tpu_custom_call.1} parent=1 // pred_region
      %48 = dma.done [#allocation4], 256
    $region13: #{tpu_custom_call.1} parent=1 // pred_fallthru
      _
    // Predicated region
    $region14: #{tpu_custom_call.1} parent=1 // pred_check
      _
    $region15: #{tpu_custom_call.1} parent=1 // pred_check_branch
      %50 = sbr.rel (0) target = $region17
    $region16: #{tpu_custom_call.1} parent=1 // pred_region
      %51 = dma.done [#allocation7], 256
    $region17: #{tpu_custom_call.1} parent=1 // pred_fallthru
      _
    %s52 = sadd.s32 0, 0
    %p53 = scmp.lt.s32.totalorder %s52, 0
    %s54 = scalar_select %p53, %s52, 0
    %s55 = smul.u32 2, %s54
    %s56 = sadd.s32 0, 0
    %p57 = scmp.lt.s32.totalorder %s56, 0
    %s58 = scalar_select %p57, %s56, 0
    %s59 = smul.u32 2, %s58
    %p60 = scmp.eq.s32.totalorder 0, 0
    // Predicated region
    $region18: #{tpu_custom_call.1} parent=1 // pred_check
      %p61 = pneg %p60
    $region19: #{tpu_custom_call.1} parent=1 // pred_check_branch
      %63 = sbr.rel (%p61) target = $region21
    $region20: #{tpu_custom_call.1} parent=1 // pred_region
      %64 = vst [vmem:[#allocation2] sm:$0xff] 0.0
      %65 = vst [vmem:[#allocation2 + $0x8] sm:$0xff] 0.0
      %66 = vst [vmem:[#allocation2 + $0x10] sm:$0xff] 0.0
      %67 = vst [vmem:[#allocation2 + $0x18] sm:$0xff] 0.0
    $region21: #{tpu_custom_call.1} parent=1 // pred_fallthru
      _
    %v68 = vld [vmem:[#allocation3] sm:$0xff]
    %v69 = vld [vmem:[#allocation3 + $0x8] sm:$0xff]
    %v70 = vld [vmem:[#allocation6] sm:$0xff]
    %v71 = vld [vmem:[#allocation6 + $0x8] sm:$0xff]
    %v72 = vlog2.pop %v68
    %v73 = vmul.f32 %v72, 0.6931472
    %v74 = vlog2.pop %v69
    %v75 = vmul.f32 %v74, 0.6931472
    %v76 = vmax.f32 %v73, -100.0
    %v77 = vmax.f32 %v75, -100.0
    %v78 = vsub.f32 0.0, %v68
    %v79 = vsub.f32 0.0, %v69
    %v80 = vadd.f32 %v78, 1.0
    %v81 = vlog2.pop %v80
    %v82 = vmul.f32 %v81, 0.6931472
    %v83 = vmul.f32 -0.5, %v78
    %v84 = vadd.f32 %v83, 1.0
    %v85 = vmul.f32 %v84, %v78
    %v86 = vand.u32 2147483647, %v78
    %vm87 = vcmp.lt.f32.partialorder %v86, 0.0004427343
    %v88 = vsel %vm87, %v85, %v82
    %v89 = vadd.f32 %v79, 1.0
    %v90 = vlog2.pop %v89
    %v91 = vmul.f32 %v90, 0.6931472
    %v92 = vmul.f32 -0.5, %v79
    %v93 = vadd.f32 %v92, 1.0
    %v94 = vmul.f32 %v93, %v79
    %v95 = vand.u32 2147483647, %v79
    %vm96 = vcmp.lt.f32.partialorder %v95, 0.0004427343
    %v97 = vsel %vm96, %v94, %v91
    %v98 = vmax.f32 %v88, -100.0
    %v99 = vmax.f32 %v97, -100.0
    %v100 = vmul.f32 %v70, -1.5
    %v101 = vmul.f32 %v71, -1.5
    %v102 = vsub.f32 %v100, 0.5
    %v103 = vsub.f32 %v101, 0.5
    %v104 = vsub.f32 %v76, %v98
    %v105 = vsub.f32 %v77, %v99
    %v106 = vmul.f32 %v70, %v104
    %v107 = vmul.f32 %v71, %v105
    %v108 = vadd.f32 %v98, %v106
    %v109 = vadd.f32 %v99, %v107
    %v110 = vmul.f32 %v102, %v108
    %v111 = vmul.f32 %v103, %v109
    %s112 = sadd.s32 0, 0
    %s113 = smul.u32 %s112, 16
    %v114 = vlaneseq
    %v115 = vshrl.u32 %v114, 7
    %v116 = vadd.s32 %v115, 8
    %v117 = vstv %s113
    %v118 = vadd.s32 %v117, %v115
    %v119 = vadd.s32 %v117, %v116
    %vm120 = vcmp.lt.s32.totalorder %v118, 16
    %vm121 = vcmp.lt.s32.totalorder %v119, 16
    %v122 = vsel %vm120, %v110, 0.0
    %v123 = vsel %vm121, %v111, 0.0
    %v124 = vld [vmem:[#allocation2] sm:$0xff]
    %v125 = vadd.f32 %v122, %v123
    %v126 = vadd.f32 %v124, %v125
    %127 = vst [vmem:[#allocation2] sm:$0xff] %v126
    // Predicated region
    $region22: #{tpu_custom_call.1} parent=1 // pred_check
      %p128 = pneg %p60
    $region23: #{tpu_custom_call.1} parent=1 // pred_check_branch
      %130 = sbr.rel (%p128) target = $region25
    $region24: #{tpu_custom_call.1} parent=1 // pred_region
      %v131 = vld [vmem:[#allocation2] sm:$0xff]
      %v132 = vld [vmem:[#allocation2 + $0x8] sm:$0xff]
      %v133 = vld [vmem:[#allocation2 + $0x10] sm:$0xff]
      %v134 = vld [vmem:[#allocation2 + $0x18] sm:$0xff]
      %v135 = vadd.f32 %v131, %v132
      %v136 = vadd.f32 %v135, %v133
      %v137 = vadd.f32 %v136, %v134
      %138 = vadd.xlane.f32.xlu0 %v137
      %v139 = vpop.xlane.xlu0 %138
      %v140 = vrot.slane %v139, 4
      %v141 = vadd.f32 %v139, %v140
      %v142 = vrot.slane %v141, 2
      %v143 = vadd.f32 %v141, %v142
      %v144 = vrot.slane %v143, 1
      %v145 = vadd.f32 %v143, %v144
      %s146 = vtos %v145
      %s147 = scalar_lea.smem [#allocation8], 0
      %148 = sst [smem:[%s147]] %s146
    $region25: #{tpu_custom_call.1} parent=1 // pred_fallthru
      _
    // Predicated region
    $region26: #{tpu_custom_call.1} parent=1 // pred_check
      _
    $region27: #{tpu_custom_call.1} parent=1 // pred_check_branch
      %150 = sbr.rel (0) target = $region29
    $region28: #{tpu_custom_call.1} parent=1 // pred_region
      %s152 = ssub.s32 16, 16
      %153 = vsyncadd [#allocation5], %s152
      %156 = dma.smem_to_hbm [#allocation8], 16, %s2, [#allocation5]
    $region29: #{tpu_custom_call.1} parent=1 // pred_fallthru
      _
    // Predicated region
    $region30: #{tpu_custom_call.1} parent=1 // pred_check
      _
    $region31: #{tpu_custom_call.1} parent=1 // pred_check_branch
      %158 = sbr.rel (0) target = $region33
    $region32: #{tpu_custom_call.1} parent=1 // pred_region
      %159 = dma.done [#allocation5], 16
    $region33: #{tpu_custom_call.1} parent=1 // pred_fallthru
      _
    %160 = sfence
    %161 = vsyncpa [#allocation4], 1
    %162 = vsyncpa [#allocation7], 1
    %163 = vsyncpa [#allocation5], 1

</llo_original>
